<compile_context>
chip_gen: v7x
topology: tpu7x:2x2x1
jax: 0.10.0
libtpu: 0.0.40
codegen_flags: <defaults>
</compile_context>

<pallas_src>
import functools

import jax
import jax.numpy as jnp
from jax.experimental import pallas as pl
from jax.experimental.pallas import tpu as pltpu


def _round_up(x, m):
    return ((x + m - 1) // m) * m


# ---------------------------------------------------------------------------
# Kernels (BN already folded into w1/w2/c1/c2; dropout == identity in eval mode)
# ---------------------------------------------------------------------------

def _resblock_proj_kernel(x_ref, w1_ref, w2_ref, wsc_ref, c_ref, o_ref):
    """relu( (relu(x@w1 + c1) @ w2 + c2) + (x@wsc + csc) ), projection shortcut."""
    x = x_ref[...]

    h = jnp.dot(x, w1_ref[...], preferred_element_type=jnp.float32) + c_ref[0:1, :]
    h = jnp.maximum(h, 0.0)

    h = jnp.dot(h.astype(w2_ref.dtype), w2_ref[...],
                preferred_element_type=jnp.float32) + c_ref[1:2, :]

    sc = jnp.dot(x, wsc_ref[...], preferred_element_type=jnp.float32) + c_ref[2:3, :]

    o_ref[...] = jnp.maximum(h + sc, 0.0).astype(o_ref.dtype)


def _resblock_identity_kernel(x_ref, w1_ref, w2_ref, c_ref, o_ref):
    """Same block with an identity shortcut (in_features == out_features): no 3rd matmul."""
    x = x_ref[...]

    h = jnp.dot(x, w1_ref[...], preferred_element_type=jnp.float32) + c_ref[0:1, :]
    h = jnp.maximum(h, 0.0)

    h = jnp.dot(h.astype(w2_ref.dtype), w2_ref[...],
                preferred_element_type=jnp.float32) + c_ref[1:2, :]

    o_ref[...] = jnp.maximum(h + x.astype(jnp.float32), 0.0).astype(o_ref.dtype)


# ---------------------------------------------------------------------------
# Parameter construction / folding
# ---------------------------------------------------------------------------

def make_params(key, in_features, out_features):
    """Raw parameters mirroring the PyTorch module (eval mode, non-trivial BN stats)."""
    ks = jax.random.split(key, 12)

    def linear_init(kw, kb, fan_in, fan_out):
        bound = 1.0 / jnp.sqrt(fan_in)
        w = jax.random.uniform(kw, (fan_out, fan_in), jnp.float32, -bound, bound)
        b = jax.random.uniform(kb, (fan_out,), jnp.float32, -bound, bound)
        return w, b

    w1, b1 = linear_init(ks[0], ks[1], in_features, out_features)
    w2, b2 = linear_init(ks[2], ks[3], out_features, out_features)

    def bn_init(kg, kb, km, kv, n):
        gamma = jax.random.uniform(kg, (n,), jnp.float32, 0.8, 1.2)
        beta = 0.1 * jax.random.normal(kb, (n,), jnp.float32)
        rmean = 0.1 * jax.random.normal(km, (n,), jnp.float32)
        rvar = jax.random.uniform(kv, (n,), jnp.float32, 0.5, 1.5)
        return gamma, beta, rmean, rvar

    g1, be1, rm1, rv1 = bn_init(ks[4], ks[5], ks[6], ks[7], out_features)
    g2, be2, rm2, rv2 = bn_init(ks[8], ks[9], ks[10], ks[11], out_features)

    params = dict(w1=w1, b1=b1, g1=g1, be1=be1, rm1=rm1, rv1=rv1,
                  w2=w2, b2=b2, g2=g2, be2=be2, rm2=rm2, rv2=rv2,
                  wsc=None, bsc=None)
    if in_features != out_features:
        kw, kb = jax.random.split(jax.random.fold_in(key, 123))
        wsc, bsc = linear_init(kw, kb, in_features, out_features)
        params["wsc"], params["bsc"] = wsc, bsc
    return params


def prepare_kernel_params(raw, *, eps=1e-5, compute_dtype=jnp.float32):
    """Fold eval-mode BN into the linear weights/biases, zero-pad features to
    multiples of 128 (lane-dense), cast weights to `compute_dtype`, and stack the
    per-feature biases into a single fp32 (8, Fout_pad) table (one small ref)."""
    out_features, in_features = raw["w1"].shape

    s1 = raw["g1"] / jnp.sqrt(raw["rv1"] + eps)
    t1 = raw["be1"] - raw["rm1"] * s1
    w1 = raw["w1"].T * s1[None, :]            # (Fin, Fout), BN1 folded in
    c1 = raw["b1"] * s1 + t1

    s2 = raw["g2"] / jnp.sqrt(raw["rv2"] + eps)
    t2 = raw["be2"] - raw["rm2"] * s2
    w2 = raw["w2"].T * s2[None, :]            # (Fout, Fout), BN2 folded in
    c2 = raw["b2"] * s2 + t2

    has_proj = raw["wsc"] is not None
    fin_p = _round_up(in_features, 128)
    fout_p = _round_up(out_features, 128)

    def pad2(w, r, c):
        return jnp.zeros((r, c), jnp.float32).at[:w.shape[0], :w.shape[1]].set(w)

    def pad1(v, n):
        return jnp.zeros((n,), jnp.float32).at[:v.shape[0]].set(v)

    c_table = jnp.zeros((8, fout_p), jnp.float32)
    c_table = c_table.at[0].set(pad1(c1, fout_p)).at[1].set(pad1(c2, fout_p))

    kp = dict(
        w1=pad2(w1, fin_p, fout_p).astype(compute_dtype),
        w2=pad2(w2, fout_p, fout_p).astype(compute_dtype),
        wsc=None,
        has_proj=has_proj,
        in_features=in_features, out_features=out_features,
        fin_p=fin_p, fout_p=fout_p,
        compute_dtype=jnp.dtype(compute_dtype),
    )
    if has_proj:
        kp["wsc"] = pad2(raw["wsc"].T, fin_p, fout_p).astype(compute_dtype)
        c_table = c_table.at[2].set(pad1(raw["bsc"], fout_p))
    kp["c"] = c_table
    return kp


# ---------------------------------------------------------------------------
# Wrapper: batch-tiled pallas_call with resident weights
# ---------------------------------------------------------------------------

_VMEM_TILE_BUDGET = 24 * 1024 * 1024   # conservative, also fits v7x's 64 MiB VMEM
_VMEM_LIMIT_BYTES = 48 * 1024 * 1024


def _choose_tile_rows(batch_rows, fin_p, fout_p, x_itemsize, resident_bytes):
    # double-buffered activation tiles + (conservatively x2) resident params
    per_row = 2 * (fin_p * x_itemsize + fout_p * 4)
    avail = _VMEM_TILE_BUDGET - 2 * resident_bytes
    tm = avail // per_row if avail > 0 else 8
    tm = int(max(8, min(tm, 1024, batch_rows)))
    return max(8, (tm // 8) * 8)


def residual_block(x, kp):
    """Fused residual block on (B, in_features) fp32 input; returns fp32 (B, out)."""
    B, fin = x.shape
    assert fin == kp["in_features"]
    fin_p, fout_p, fout = kp["fin_p"], kp["fout_p"], kp["out_features"]
    cdt = kp["compute_dtype"]
    itemsize = jnp.dtype(cdt).itemsize

    weights = [kp["w1"], kp["w2"]] + ([kp["wsc"]] if kp["has_proj"] else [])
    resident_bytes = sum(w.size * w.dtype.itemsize for w in weights) + kp["c"].size * 4

    b8 = _round_up(B, 8)
    tm = _choose_tile_rows(b8, fin_p, fout_p, itemsize, resident_bytes)
    b_pad = _round_up(b8, tm)

    xp = jnp.zeros((b_pad, fin_p), cdt).at[:B, :fin].set(x.astype(cdt))

    act_spec = pl.BlockSpec((tm, fin_p), lambda i: (i, 0))
    out_spec = pl.BlockSpec((tm, fout_p), lambda i: (i, 0))
    resident = lambda shape: pl.BlockSpec(shape, lambda i: (0, 0))

    if kp["has_proj"]:
        kernel = _resblock_proj_kernel
        args = (xp, kp["w1"], kp["w2"], kp["wsc"], kp["c"])
        in_specs = [act_spec,
                    resident((fin_p, fout_p)),
                    resident((fout_p, fout_p)),
                    resident((fin_p, fout_p)),
                    resident((8, fout_p))]
        matmul_flops = 2 * b_pad * fout_p * (fin_p + fout_p + fin_p)
    else:
        kernel = _resblock_identity_kernel
        args = (xp, kp["w1"], kp["w2"], kp["c"])
        in_specs = [act_spec,
                    resident((fin_p, fout_p)),
                    resident((fout_p, fout_p)),
                    resident((8, fout_p))]
        matmul_flops = 2 * b_pad * fout_p * (fin_p + fout_p)

    bytes_accessed = xp.size * itemsize + resident_bytes + b_pad * fout_p * 4

    out = pl.pallas_call(
        kernel,
        out_shape=jax.ShapeDtypeStruct((b_pad, fout_p), jnp.float32),
        grid=(b_pad // tm,),
        in_specs=in_specs,
        out_specs=out_spec,
        compiler_params=pltpu.CompilerParams(
            dimension_semantics=("parallel",),   # shard batch tiles across TCs on v7x
            vmem_limit_bytes=_VMEM_LIMIT_BYTES,
        ),
        cost_estimate=pl.CostEstimate(
            flops=int(matmul_flops),
            transcendentals=0,
            bytes_accessed=int(bytes_accessed),
        ),
    )(*args)

    return out[:B, :fout]


# ---------------------------------------------------------------------------
# Pure-JAX reference (un-fused eval-mode forward of the original module)
# ---------------------------------------------------------------------------

def residual_block_ref(x, raw, eps=1e-5):
    dot = functools.partial(jnp.dot, precision=jax.lax.Precision.HIGHEST)
    h = dot(x, raw["w1"].T) + raw["b1"]
    h = (h - raw["rm1"]) / jnp.sqrt(raw["rv1"] + eps) * raw["g1"] + raw["be1"]
    h = jnp.maximum(h, 0.0)
    h = dot(h, raw["w2"].T) + raw["b2"]
    h = (h - raw["rm2"]) / jnp.sqrt(raw["rv2"] + eps) * raw["g2"] + raw["be2"]
    # dropout: identity in eval mode
    sc = dot(x, raw["wsc"].T) + raw["bsc"] if raw["wsc"] is not None else x
    return jnp.maximum(h + sc, 0.0)


if __name__ == "__main__":
    key = jax.random.PRNGKey(0)

    # Case 1: projection shortcut (in_features != out_features), fp32 weights.
    B, fin, fout = 8, 32, 64
    kx, kparam = jax.random.split(key)
    x = jax.random.normal(kx, (B, fin), jnp.float32)
    raw = make_params(kparam, fin, fout)
    kp = prepare_kernel_params(raw, compute_dtype=jnp.float32)
    out = jax.block_until_ready(residual_block(x, kp))
    ref = residual_block_ref(x, raw)
    assert out.shape == (B, fout)
    assert jnp.allclose(out, ref, atol=1e-4, rtol=1e-4), \
        float(jnp.max(jnp.abs(out - ref)))

    # Case 2: identity shortcut (in == out), bf16 weights/activations, fp32 accumulation.
    B2, f2 = 16, 64
    kx2, kparam2 = jax.random.split(jax.random.fold_in(key, 1))
    x2 = jax.random.normal(kx2, (B2, f2), jnp.float32)
    raw2 = make_params(kparam2, f2, f2)
    kp2 = prepare_kernel_params(raw2, compute_dtype=jnp.bfloat16)
    out2 = jax.block_until_ready(residual_block(x2, kp2))
    ref2 = residual_block_ref(x2, raw2)
    assert out2.shape == (B2, f2)
    assert jnp.allclose(out2, ref2, atol=7.5e-2, rtol=7.5e-2), \
        float(jnp.max(jnp.abs(out2 - ref2)))

    print("KERNEL_OK")
</pallas_src>

<mosaic_0001>
module attributes {stable_mosaic.version = 11 : i64} {
  func.func @_resblock_proj_kernel(%arg0: i32, %arg1: memref<8x128xf32, #tpu.memory_space<vmem>>, %arg2: memref<128x128xf32, #tpu.memory_space<vmem>>, %arg3: memref<128x128xf32, #tpu.memory_space<vmem>>, %arg4: memref<128x128xf32, #tpu.memory_space<vmem>>, %arg5: memref<8x128xf32, #tpu.memory_space<vmem>>, %arg6: memref<8x128xf32, #tpu.memory_space<vmem>>) attributes {dimension_semantics = [#tpu.dimension_semantics<parallel>], iteration_bounds = array<i64: 1>, scalar_prefetch = 0 : i64, scratch_operands = 0 : i64, tpu.core_type = #tpu.core_type<tc>, window_params = [{transform_indices = @transform_0, window_bounds = array<i64: 8, 128>}, {pipeline_mode = #tpu.pipeline_mode<synchronous>, transform_indices = @transform_1, window_bounds = array<i64: 128, 128>}, {pipeline_mode = #tpu.pipeline_mode<synchronous>, transform_indices = @transform_2, window_bounds = array<i64: 128, 128>}, {pipeline_mode = #tpu.pipeline_mode<synchronous>, transform_indices = @transform_3, window_bounds = array<i64: 128, 128>}, {pipeline_mode = #tpu.pipeline_mode<synchronous>, transform_indices = @transform_4, window_bounds = array<i64: 8, 128>}, {transform_indices = @transform_5, window_bounds = array<i64: 8, 128>}]} {
    %c0 = arith.constant 0 : index
    %c0_0 = arith.constant 0 : index
    %0 = vector.load %arg1[%c0, %c0_0] : memref<8x128xf32, #tpu.memory_space<vmem>>, vector<8x128xf32>
    %c0_1 = arith.constant 0 : index
    %c0_2 = arith.constant 0 : index
    %1 = vector.load %arg2[%c0_1, %c0_2] : memref<128x128xf32, #tpu.memory_space<vmem>>, vector<128x128xf32>
    %cst = arith.constant dense<0.000000e+00> : vector<8x128xf32>
    %2 = tpu.matmul %0, %1, %cst {dimension_numbers = #tpu.dot_dimension_numbers<[1], [0], [0], [1], [0, 0, 1, 1], [], []>} : vector<8x128xf32>, vector<128x128xf32>, vector<8x128xf32> -> vector<8x128xf32>
    %c0_3 = arith.constant 0 : index
    %c0_4 = arith.constant 0 : index
    %3 = vector.load %arg5[%c0_3, %c0_4] : memref<8x128xf32, #tpu.memory_space<vmem>>, vector<1x128xf32>
    %4 = vector.broadcast %3 : vector<1x128xf32> to vector<8x128xf32>
    %5 = arith.addf %2, %4 : vector<8x128xf32>
    %cst_5 = arith.constant 0.000000e+00 : f32
    %6 = vector.broadcast %cst_5 : f32 to vector<8x128xf32>
    %7 = arith.maximumf %5, %6 : vector<8x128xf32>
    %c0_6 = arith.constant 0 : index
    %c0_7 = arith.constant 0 : index
    %8 = vector.load %arg3[%c0_6, %c0_7] : memref<128x128xf32, #tpu.memory_space<vmem>>, vector<128x128xf32>
    %cst_8 = arith.constant dense<0.000000e+00> : vector<8x128xf32>
    %9 = tpu.matmul %7, %8, %cst_8 {dimension_numbers = #tpu.dot_dimension_numbers<[1], [0], [0], [1], [0, 0, 1, 1], [], []>} : vector<8x128xf32>, vector<128x128xf32>, vector<8x128xf32> -> vector<8x128xf32>
    %c1 = arith.constant 1 : index
    %c0_9 = arith.constant 0 : index
    %10 = vector.load %arg5[%c1, %c0_9] : memref<8x128xf32, #tpu.memory_space<vmem>>, vector<1x128xf32>
    %11 = vector.broadcast %10 : vector<1x128xf32> to vector<8x128xf32>
    %12 = arith.addf %9, %11 : vector<8x128xf32>
    %c0_10 = arith.constant 0 : index
    %c0_11 = arith.constant 0 : index
    %13 = vector.load %arg4[%c0_10, %c0_11] : memref<128x128xf32, #tpu.memory_space<vmem>>, vector<128x128xf32>
    %cst_12 = arith.constant dense<0.000000e+00> : vector<8x128xf32>
    %14 = tpu.matmul %0, %13, %cst_12 {dimension_numbers = #tpu.dot_dimension_numbers<[1], [0], [0], [1], [0, 0, 1, 1], [], []>} : vector<8x128xf32>, vector<128x128xf32>, vector<8x128xf32> -> vector<8x128xf32>
    %c2 = arith.constant 2 : index
    %c0_13 = arith.constant 0 : index
    %15 = vector.load %arg5[%c2, %c0_13] : memref<8x128xf32, #tpu.memory_space<vmem>>, vector<1x128xf32>
    %16 = vector.broadcast %15 : vector<1x128xf32> to vector<8x128xf32>
    %17 = arith.addf %14, %16 : vector<8x128xf32>
    %18 = arith.addf %12, %17 : vector<8x128xf32>
    %cst_14 = arith.constant 0.000000e+00 : f32
    %19 = vector.broadcast %cst_14 : f32 to vector<8x128xf32>
    %20 = arith.maximumf %18, %19 : vector<8x128xf32>
    %c0_15 = arith.constant 0 : index
    %c0_16 = arith.constant 0 : index
    %21 = vector.load %arg6[%c0_15, %c0_16] : memref<8x128xf32, #tpu.memory_space<vmem>>, vector<8x128xf32>
    tpu.vector_store %arg6[%c0_15, %c0_16], %20 {strides = array<i32>} : memref<8x128xf32, #tpu.memory_space<vmem>>, vector<8x128xf32>,
    return
  }
  func.func @transform_0(%arg0: i32) -> (i32, i32) {
    %c0_i32 = arith.constant 0 : i32
    %c0_i32_0 = arith.constant 0 : i32
    return %arg0, %c0_i32 : i32, i32
  }
  func.func @transform_1(%arg0: i32) -> (i32, i32) {
    %c0_i32 = arith.constant 0 : i32
    %c0_i32_0 = arith.constant 0 : i32
    %c0_i32_1 = arith.constant 0 : i32
    return %c0_i32, %c0_i32_0 : i32, i32
  }
  func.func @transform_2(%arg0: i32) -> (i32, i32) {
    %c0_i32 = arith.constant 0 : i32
    %c0_i32_0 = arith.constant 0 : i32
    %c0_i32_1 = arith.constant 0 : i32
    return %c0_i32, %c0_i32_0 : i32, i32
  }
  func.func @transform_3(%arg0: i32) -> (i32, i32) {
    %c0_i32 = arith.constant 0 : i32
    %c0_i32_0 = arith.constant 0 : i32
    %c0_i32_1 = arith.constant 0 : i32
    return %c0_i32, %c0_i32_0 : i32, i32
  }
  func.func @transform_4(%arg0: i32) -> (i32, i32) {
    %c0_i32 = arith.constant 0 : i32
    %c0_i32_0 = arith.constant 0 : i32
    %c0_i32_1 = arith.constant 0 : i32
    return %c0_i32, %c0_i32_0 : i32, i32
  }
  func.func @transform_5(%arg0: i32) -> (i32, i32) {
    %c0_i32 = arith.constant 0 : i32
    %c0_i32_0 = arith.constant 0 : i32
    return %arg0, %c0_i32 : i32, i32
  }
}

</mosaic_0001>

<llo_original>
// kernel: tpu_custom_call.1
$region0: #{tpu_custom_call.1}
  #allocation0 [shape = 'u32[]', space=smem, size = 0x4, offset = 0x4, fixed_abs, tag = 'smem constant byte address 0x4 - core index']
  #allocation1 [shape = 'u32[144,128]{1,0:T(1,128)}', space=vmem, size = 0x12000, scoped, tag = 'internal scratch']
  %s0 = inlined_call_operand.hbm [shape: f32[8,128], index: 0, kind: input, shape index: {}]
  %s1 = inlined_call_operand.hbm [shape: f32[128,128], index: 1, kind: input, shape index: {}]
  %s2 = inlined_call_operand.hbm [shape: f32[128,128], index: 2, kind: input, shape index: {}]
  %s3 = inlined_call_operand.hbm [shape: f32[128,128], index: 3, kind: input, shape index: {}]
  %s4 = inlined_call_operand.vmem [shape: f32[8,128], index: 4, kind: input, shape index: {}]
  %s5 = inlined_call_operand.hbm [shape: f32[8,128], index: 5, kind: output, shape index: {}]
  %s6 = sld [smem:[#allocation0]]
  $region46: #{tpu_custom_call.1} parent=0
    _
  %s8 = ssub.s32 1, %s6
  %s9 = scalar_select 0, %s8, %s6
  $region1: #{tpu_custom_call.1} parent=0
    #allocation2 [shape = 'u8[4096]{0}', space=vmem, size = 0x1000, scoped, tag = 'input window, operand 0, single buffered']
    #allocation3 [shape = 's32[1]{0}', space=sflag, size = 0x4, scoped, tag = 'scoped memory for tpu_custom_call.1']
    #allocation4 [shape = 's32[1]{0}', space=sflag, size = 0x4, scoped, tag = 'scoped memory for tpu_custom_call.1']
    #allocation5 [shape = 'u8[65536]{0}', space=vmem, size = 0x10000, scoped, tag = 'input window, operand 1, single buffered']
    #allocation6 [shape = 's32[1]{0}', space=sflag, size = 0x4, scoped, tag = 'scoped memory for tpu_custom_call.1']
    #allocation7 [shape = 'u8[65536]{0}', space=vmem, size = 0x10000, scoped, tag = 'input window, operand 2, single buffered']
    #allocation8 [shape = 'u8[65536]{0}', space=vmem, size = 0x10000, scoped, tag = 'input window, operand 3, single buffered']
    #allocation9 [shape = 's32[1]{0}', space=sflag, size = 0x4, scoped, tag = 'scoped memory for tpu_custom_call.1']
    #allocation10 [shape = 'u8[4096]{0}', space=vmem, size = 0x1000, scoped, tag = 'output window, operand 0, single buffered']
    %10 = vsyncpa [#allocation3], 0
    %11 = vsyncpa [#allocation6], 0
    %12 = vsyncpa [#allocation9], 0
    %13 = vsyncpa [#allocation4], 0
    // Predicated region
    $region2: #{tpu_custom_call.1} parent=1 // pred_check
      _
    $region3: #{tpu_custom_call.1} parent=1 // pred_check_branch
      %15 = sbr.rel (0) target = $region5
    $region4: #{tpu_custom_call.1} parent=1 // pred_region
      %s17 = ssub.s32 128, 128
      %18 = vsyncadd [#allocation3], %s17
      %s20 = sshll.u32 [#allocation2], 4
      %s21 = int_to_ptr.vmem [resolvable:$true] %s20
      %23 = dma.hbm_to_vmem [thread:$0]  %s0, 128, %s21, [#allocation3]
    $region5: #{tpu_custom_call.1} parent=1 // pred_fallthru
      _
    // Predicated region
    $region6: #{tpu_custom_call.1} parent=1 // pred_check
      _
    $region7: #{tpu_custom_call.1} parent=1 // pred_check_branch
      %25 = sbr.rel (0) target = $region9
    $region8: #{tpu_custom_call.1} parent=1 // pred_region
      %s27 = ssub.s32 2048, 2048
      %28 = vsyncadd [#allocation6], %s27
      %s29 = sshll.u32 [#allocation5], 4
      %s30 = int_to_ptr.vmem [resolvable:$true] %s29
      %35 = dma.hbm_to_vmem [thread:$0]  %s1, 2048, %s30, [#allocation6], 128, 128, 8
    $region9: #{tpu_custom_call.1} parent=1 // pred_fallthru
      _
    // Predicated region
    $region10: #{tpu_custom_call.1} parent=1 // pred_check
      _
    $region11: #{tpu_custom_call.1} parent=1 // pred_check_branch
      %37 = sbr.rel (0) target = $region13
    $region12: #{tpu_custom_call.1} parent=1 // pred_region
      %s39 = ssub.s32 2048, 2048
      %40 = vsyncadd [#allocation6], %s39
      %s41 = sshll.u32 [#allocation7], 4
      %s42 = int_to_ptr.vmem [resolvable:$true] %s41
      %47 = dma.hbm_to_vmem [thread:$0]  %s2, 2048, %s42, [#allocation6], 128, 128, 8
    $region13: #{tpu_custom_call.1} parent=1 // pred_fallthru
      _
    // Predicated region
    $region14: #{tpu_custom_call.1} parent=1 // pred_check
      _
    $region15: #{tpu_custom_call.1} parent=1 // pred_check_branch
      %49 = sbr.rel (0) target = $region17
    $region16: #{tpu_custom_call.1} parent=1 // pred_region
      %s51 = ssub.s32 2048, 2048
      %52 = vsyncadd [#allocation9], %s51
      %s53 = sshll.u32 [#allocation8], 4
      %s54 = int_to_ptr.vmem [resolvable:$true] %s53
      %59 = dma.hbm_to_vmem [thread:$0]  %s3, 2048, %s54, [#allocation9], 128, 128, 8
    $region17: #{tpu_custom_call.1} parent=1 // pred_fallthru
      _
    // Predicated region
    $region18: #{tpu_custom_call.1} parent=1 // pred_check
      _
    $region19: #{tpu_custom_call.1} parent=1 // pred_check_branch
      %61 = sbr.rel (0) target = $region21
    $region20: #{tpu_custom_call.1} parent=1 // pred_region
      _
    $region21: #{tpu_custom_call.1} parent=1 // pred_fallthru
      _
    // Predicated region
    $region22: #{tpu_custom_call.1} parent=1 // pred_check
      _
    $region23: #{tpu_custom_call.1} parent=1 // pred_check_branch
      %63 = sbr.rel (0) target = $region25
    $region24: #{tpu_custom_call.1} parent=1 // pred_region
      %64 = dma.done [#allocation3], 128
    $region25: #{tpu_custom_call.1} parent=1 // pred_fallthru
      _
    // Predicated region
    $region26: #{tpu_custom_call.1} parent=1 // pred_check
      _
    $region27: #{tpu_custom_call.1} parent=1 // pred_check_branch
      %66 = sbr.rel (0) target = $region29
    $region28: #{tpu_custom_call.1} parent=1 // pred_region
      %67 = dma.done [#allocation6], 2048
    $region29: #{tpu_custom_call.1} parent=1 // pred_fallthru
      _
    // Predicated region
    $region30: #{tpu_custom_call.1} parent=1 // pred_check
      _
    $region31: #{tpu_custom_call.1} parent=1 // pred_check_branch
      %69 = sbr.rel (0) target = $region33
    $region32: #{tpu_custom_call.1} parent=1 // pred_region
      %70 = dma.done [#allocation6], 2048
    $region33: #{tpu_custom_call.1} parent=1 // pred_fallthru
      _
    // Predicated region
    $region34: #{tpu_custom_call.1} parent=1 // pred_check
      _
    $region35: #{tpu_custom_call.1} parent=1 // pred_check_branch
      %72 = sbr.rel (0) target = $region37
    $region36: #{tpu_custom_call.1} parent=1 // pred_region
      %73 = dma.done [#allocation9], 2048
    $region37: #{tpu_custom_call.1} parent=1 // pred_fallthru
      _
    %v74 = vld [vmem:[#allocation2] sm:$0xff]
    %v75 = vld [vmem:[#allocation5] sm:$0xff]
    %v76 = vld [vmem:[#allocation5 + $0x8] sm:$0xff]
    %v77 = vld [vmem:[#allocation5 + $0x10] sm:$0xff]
    %v78 = vld [vmem:[#allocation5 + $0x18] sm:$0xff]
    %v79 = vld [vmem:[#allocation5 + $0x20] sm:$0xff]
    %v80 = vld [vmem:[#allocation5 + $0x28] sm:$0xff]
    %v81 = vld [vmem:[#allocation5 + $0x30] sm:$0xff]
    %v82 = vld [vmem:[#allocation5 + $0x38] sm:$0xff]
    %v83 = vld [vmem:[#allocation5 + $0x40] sm:$0xff]
    %v84 = vld [vmem:[#allocation5 + $0x48] sm:$0xff]
    %v85 = vld [vmem:[#allocation5 + $0x50] sm:$0xff]
    %v86 = vld [vmem:[#allocation5 + $0x58] sm:$0xff]
    %v87 = vld [vmem:[#allocation5 + $0x60] sm:$0xff]
    %v88 = vld [vmem:[#allocation5 + $0x68] sm:$0xff]
    %v89 = vld [vmem:[#allocation5 + $0x70] sm:$0xff]
    %v90 = vld [vmem:[#allocation5 + $0x78] sm:$0xff]
    %v91 = vld [vmem:[%s4] sm:$0x1]
    %v92 = vlaneseq
    %v93 = vshrl.u32 %v92, 7
    %v94 = vsub.s32 0, %v93
    %v95 = vrot.slane %v91, %v94
    %96 = vmatprep.subr.mxu0 0.0
    %97 = vmatpush1.msra.mxu0 %v75
    %98 = vmatprep.subr.mxu0 0.0
    %99 = vmatpush1.msra.mxu0 %v76
    %100 = vmatprep.subr.mxu0 0.0
    %101 = vmatpush1.msra.mxu0 %v77
    %102 = vmatprep.subr.mxu0 0.0
    %103 = vmatpush1.msra.mxu0 %v78
    %104 = vmatprep.subr.mxu0 0.0
    %105 = vmatpush1.msra.mxu0 %v79
    %106 = vmatprep.subr.mxu0 0.0
    %107 = vmatpush1.msra.mxu0 %v80
    %108 = vmatprep.subr.mxu0 0.0
    %109 = vmatpush1.msra.mxu0 %v81
    %110 = vmatprep.subr.mxu0 0.0
    %111 = vmatpush1.msra.mxu0 %v82
    %112 = vmatprep.subr.mxu0 0.0
    %113 = vmatpush1.msra.mxu0 %v83
    %114 = vmatprep.subr.mxu0 0.0
    %115 = vmatpush1.msra.mxu0 %v84
    %116 = vmatprep.subr.mxu0 0.0
    %117 = vmatpush1.msra.mxu0 %v85
    %118 = vmatprep.subr.mxu0 0.0
    %119 = vmatpush1.msra.mxu0 %v86
    %120 = vmatprep.subr.mxu0 0.0
    %121 = vmatpush1.msra.mxu0 %v87
    %122 = vmatprep.subr.mxu0 0.0
    %123 = vmatpush1.msra.mxu0 %v88
    %124 = vmatprep.subr.mxu0 0.0
    %125 = vmatpush1.msra.mxu0 %v89
    %126 = vmatprep.subr.mxu0 0.0
    %127 = vmatpush1.msra.mxu0 %v90
    %128 = vmatprep.subr.mxu0 0.0
    %129 = vmatpush1.msra.mxu0 0.0
    %130 = vmatprep.subr.mxu0 0.0
    %131 = vmatpush1.msra.mxu0 0.0
    %132 = vmatprep.subr.mxu0 0.0
    %133 = vmatpush1.msra.mxu0 0.0
    %134 = vmatprep.subr.mxu0 0.0
    %135 = vmatpush1.msra.mxu0 0.0
    %136 = vmatprep.subr.mxu0 0.0
    %137 = vmatpush1.msra.mxu0 0.0
    %138 = vmatprep.subr.mxu0 0.0
    %139 = vmatpush1.msra.mxu0 0.0
    %140 = vmatprep.subr.mxu0 0.0
    %141 = vmatpush1.msra.mxu0 0.0
    %142 = vmatprep.subr.mxu0 0.0
    %143 = vmatpush1.msra.mxu0 0.0
    %144 = vmatprep.subr.mxu0 0.0
    %145 = vmatpush1.msra.mxu0 0.0
    %146 = vmatprep.subr.mxu0 0.0
    %147 = vmatpush1.msra.mxu0 0.0
    %148 = vmatprep.subr.mxu0 0.0
    %149 = vmatpush1.msra.mxu0 0.0
    %150 = vmatprep.subr.mxu0 0.0
    %151 = vmatpush1.msra.mxu0 0.0
    %152 = vmatprep.subr.mxu0 0.0
    %153 = vmatpush1.msra.mxu0 0.0
    %154 = vmatprep.subr.mxu0 0.0
    %155 = vmatpush1.msra.mxu0 0.0
    %156 = vmatprep.subr.mxu0 0.0
    %157 = vmatpush1.msra.mxu0 0.0
    %158 = vmatprep.subr.mxu0 0.0
    %159 = vmatpush1.msra.mxu0 0.0
    %160 = vmatprep.mubr.f32.mxu0 0.0
    %161 = vmatmul.mubr.f32.gmra.mrb[0].mxu0 %v74
    %v162 = vpop.f32.mrb[0].mxu0
    %v163 = vadd.f32 %v95, %v162
    %v164 = vpop.f32.mrb[0].mxu0
    %165 = vdwg.mxu0
    %v166 = vmax.f32 %v163, 0.0
    %v167 = vld [vmem:[#allocation7] sm:$0xff]
    %v168 = vld [vmem:[#allocation7 + $0x8] sm:$0xff]
    %v169 = vld [vmem:[#allocation7 + $0x10] sm:$0xff]
    %v170 = vld [vmem:[#allocation7 + $0x18] sm:$0xff]
    %v171 = vld [vmem:[#allocation7 + $0x20] sm:$0xff]
    %v172 = vld [vmem:[#allocation7 + $0x28] sm:$0xff]
    %v173 = vld [vmem:[#allocation7 + $0x30] sm:$0xff]
    %v174 = vld [vmem:[#allocation7 + $0x38] sm:$0xff]
    %v175 = vld [vmem:[#allocation7 + $0x40] sm:$0xff]
    %v176 = vld [vmem:[#allocation7 + $0x48] sm:$0xff]
    %v177 = vld [vmem:[#allocation7 + $0x50] sm:$0xff]
    %v178 = vld [vmem:[#allocation7 + $0x58] sm:$0xff]
    %v179 = vld [vmem:[#allocation7 + $0x60] sm:$0xff]
    %v180 = vld [vmem:[#allocation7 + $0x68] sm:$0xff]
    %v181 = vld [vmem:[#allocation7 + $0x70] sm:$0xff]
    %v182 = vld [vmem:[#allocation7 + $0x78] sm:$0xff]
    %v183 = vld [vmem:[%s4 + $0x1] sm:$0x1]
    %v184 = vlaneseq
    %v185 = vshrl.u32 %v184, 7
    %v186 = vsub.s32 0, %v185
    %v187 = vrot.slane %v183, %v186
    %188 = vmatprep.subr.mxu0 0.0
    %189 = vmatpush1.msra.mxu0 %v167
    %190 = vmatprep.subr.mxu0 0.0
    %191 = vmatpush1.msra.mxu0 %v168
    %192 = vmatprep.subr.mxu0 0.0
    %193 = vmatpush1.msra.mxu0 %v169
    %194 = vmatprep.subr.mxu0 0.0
    %195 = vmatpush1.msra.mxu0 %v170
    %196 = vmatprep.subr.mxu0 0.0
    %197 = vmatpush1.msra.mxu0 %v171
    %198 = vmatprep.subr.mxu0 0.0
    %199 = vmatpush1.msra.mxu0 %v172
    %200 = vmatprep.subr.mxu0 0.0
    %201 = vmatpush1.msra.mxu0 %v173
    %202 = vmatprep.subr.mxu0 0.0
    %203 = vmatpush1.msra.mxu0 %v174
    %204 = vmatprep.subr.mxu0 0.0
    %205 = vmatpush1.msra.mxu0 %v175
    %206 = vmatprep.subr.mxu0 0.0
    %207 = vmatpush1.msra.mxu0 %v176
    %208 = vmatprep.subr.mxu0 0.0
    %209 = vmatpush1.msra.mxu0 %v177
    %210 = vmatprep.subr.mxu0 0.0
    %211 = vmatpush1.msra.mxu0 %v178
    %212 = vmatprep.subr.mxu0 0.0
    %213 = vmatpush1.msra.mxu0 %v179
    %214 = vmatprep.subr.mxu0 0.0
    %215 = vmatpush1.msra.mxu0 %v180
    %216 = vmatprep.subr.mxu0 0.0
    %217 = vmatpush1.msra.mxu0 %v181
    %218 = vmatprep.subr.mxu0 0.0
    %219 = vmatpush1.msra.mxu0 %v182
    %220 = vmatprep.subr.mxu0 0.0
    %221 = vmatpush1.msra.mxu0 0.0
    %222 = vmatprep.subr.mxu0 0.0
    %223 = vmatpush1.msra.mxu0 0.0
    %224 = vmatprep.subr.mxu0 0.0
    %225 = vmatpush1.msra.mxu0 0.0
    %226 = vmatprep.subr.mxu0 0.0
    %227 = vmatpush1.msra.mxu0 0.0
    %228 = vmatprep.subr.mxu0 0.0
    %229 = vmatpush1.msra.mxu0 0.0
    %230 = vmatprep.subr.mxu0 0.0
    %231 = vmatpush1.msra.mxu0 0.0
    %232 = vmatprep.subr.mxu0 0.0
    %233 = vmatpush1.msra.mxu0 0.0
    %234 = vmatprep.subr.mxu0 0.0
    %235 = vmatpush1.msra.mxu0 0.0
    %236 = vmatprep.subr.mxu0 0.0
    %237 = vmatpush1.msra.mxu0 0.0
    %238 = vmatprep.subr.mxu0 0.0
    %239 = vmatpush1.msra.mxu0 0.0
    %240 = vmatprep.subr.mxu0 0.0
    %241 = vmatpush1.msra.mxu0 0.0
    %242 = vmatprep.subr.mxu0 0.0
    %243 = vmatpush1.msra.mxu0 0.0
    %244 = vmatprep.subr.mxu0 0.0
    %245 = vmatpush1.msra.mxu0 0.0
    %246 = vmatprep.subr.mxu0 0.0
    %247 = vmatpush1.msra.mxu0 0.0
    %248 = vmatprep.subr.mxu0 0.0
    %249 = vmatpush1.msra.mxu0 0.0
    %250 = vmatprep.subr.mxu0 0.0
    %251 = vmatpush1.msra.mxu0 0.0
    %252 = vmatprep.mubr.f32.mxu0 0.0
    %253 = vmatmul.mubr.f32.gmra.mrb[0].mxu0 %v166
    %v254 = vpop.f32.mrb[0].mxu0
    %v255 = vadd.f32 %v187, %v254
    %v256 = vpop.f32.mrb[0].mxu0
    %257 = vdwg.mxu0
    %v258 = vld [vmem:[#allocation8] sm:$0xff]
    %v259 = vld [vmem:[#allocation8 + $0x8] sm:$0xff]
    %v260 = vld [vmem:[#allocation8 + $0x10] sm:$0xff]
    %v261 = vld [vmem:[#allocation8 + $0x18] sm:$0xff]
    %v262 = vld [vmem:[#allocation8 + $0x20] sm:$0xff]
    %v263 = vld [vmem:[#allocation8 + $0x28] sm:$0xff]
    %v264 = vld [vmem:[#allocation8 + $0x30] sm:$0xff]
    %v265 = vld [vmem:[#allocation8 + $0x38] sm:$0xff]
    %v266 = vld [vmem:[#allocation8 + $0x40] sm:$0xff]
    %v267 = vld [vmem:[#allocation8 + $0x48] sm:$0xff]
    %v268 = vld [vmem:[#allocation8 + $0x50] sm:$0xff]
    %v269 = vld [vmem:[#allocation8 + $0x58] sm:$0xff]
    %v270 = vld [vmem:[#allocation8 + $0x60] sm:$0xff]
    %v271 = vld [vmem:[#allocation8 + $0x68] sm:$0xff]
    %v272 = vld [vmem:[#allocation8 + $0x70] sm:$0xff]
    %v273 = vld [vmem:[#allocation8 + $0x78] sm:$0xff]
    %v274 = vld [vmem:[%s4 + $0x2] sm:$0x1]
    %v275 = vlaneseq
    %v276 = vshrl.u32 %v275, 7
    %v277 = vsub.s32 0, %v276
    %v278 = vrot.slane %v274, %v277
    %279 = vmatprep.subr.mxu0 0.0
    %280 = vmatpush1.msra.mxu0 %v258
    %281 = vmatprep.subr.mxu0 0.0
    %282 = vmatpush1.msra.mxu0 %v259
    %283 = vmatprep.subr.mxu0 0.0
    %284 = vmatpush1.msra.mxu0 %v260
    %285 = vmatprep.subr.mxu0 0.0
    %286 = vmatpush1.msra.mxu0 %v261
    %287 = vmatprep.subr.mxu0 0.0
    %288 = vmatpush1.msra.mxu0 %v262
    %289 = vmatprep.subr.mxu0 0.0
    %290 = vmatpush1.msra.mxu0 %v263
    %291 = vmatprep.subr.mxu0 0.0
    %292 = vmatpush1.msra.mxu0 %v264
    %293 = vmatprep.subr.mxu0 0.0
    %294 = vmatpush1.msra.mxu0 %v265
    %295 = vmatprep.subr.mxu0 0.0
    %296 = vmatpush1.msra.mxu0 %v266
    %297 = vmatprep.subr.mxu0 0.0
    %298 = vmatpush1.msra.mxu0 %v267
    %299 = vmatprep.subr.mxu0 0.0
    %300 = vmatpush1.msra.mxu0 %v268
    %301 = vmatprep.subr.mxu0 0.0
    %302 = vmatpush1.msra.mxu0 %v269
    %303 = vmatprep.subr.mxu0 0.0
    %304 = vmatpush1.msra.mxu0 %v270
    %305 = vmatprep.subr.mxu0 0.0
    %306 = vmatpush1.msra.mxu0 %v271
    %307 = vmatprep.subr.mxu0 0.0
    %308 = vmatpush1.msra.mxu0 %v272
    %309 = vmatprep.subr.mxu0 0.0
    %310 = vmatpush1.msra.mxu0 %v273
    %311 = vmatprep.subr.mxu0 0.0
    %312 = vmatpush1.msra.mxu0 0.0
    %313 = vmatprep.subr.mxu0 0.0
    %314 = vmatpush1.msra.mxu0 0.0
    %315 = vmatprep.subr.mxu0 0.0
    %316 = vmatpush1.msra.mxu0 0.0
    %317 = vmatprep.subr.mxu0 0.0
    %318 = vmatpush1.msra.mxu0 0.0
    %319 = vmatprep.subr.mxu0 0.0
    %320 = vmatpush1.msra.mxu0 0.0
    %321 = vmatprep.subr.mxu0 0.0
    %322 = vmatpush1.msra.mxu0 0.0
    %323 = vmatprep.subr.mxu0 0.0
    %324 = vmatpush1.msra.mxu0 0.0
    %325 = vmatprep.subr.mxu0 0.0
    %326 = vmatpush1.msra.mxu0 0.0
    %327 = vmatprep.subr.mxu0 0.0
    %328 = vmatpush1.msra.mxu0 0.0
    %329 = vmatprep.subr.mxu0 0.0
    %330 = vmatpush1.msra.mxu0 0.0
    %331 = vmatprep.subr.mxu0 0.0
    %332 = vmatpush1.msra.mxu0 0.0
    %333 = vmatprep.subr.mxu0 0.0
    %334 = vmatpush1.msra.mxu0 0.0
    %335 = vmatprep.subr.mxu0 0.0
    %336 = vmatpush1.msra.mxu0 0.0
    %337 = vmatprep.subr.mxu0 0.0
    %338 = vmatpush1.msra.mxu0 0.0
    %339 = vmatprep.subr.mxu0 0.0
    %340 = vmatpush1.msra.mxu0 0.0
    %341 = vmatprep.subr.mxu0 0.0
    %342 = vmatpush1.msra.mxu0 0.0
    %343 = vmatprep.mubr.f32.mxu0 0.0
    %344 = vmatmul.mubr.f32.gmra.mrb[0].mxu0 %v74
    %v345 = vpop.f32.mrb[0].mxu0
    %v346 = vadd.f32 %v278, %v345
    %v347 = vpop.f32.mrb[0].mxu0
    %348 = vdwg.mxu0
    %v349 = vadd.f32 %v255, %v346
    %v350 = vmax.f32 %v349, 0.0
    %351 = vst [vmem:[#allocation10] sm:$0xff] %v350
    // Predicated region
    $region38: #{tpu_custom_call.1} parent=1 // pred_check
      _
    $region39: #{tpu_custom_call.1} parent=1 // pred_check_branch
      %353 = sbr.rel (0) target = $region41
    $region40: #{tpu_custom_call.1} parent=1 // pred_region
      %s355 = ssub.s32 128, 128
      %356 = vsyncadd [#allocation4], %s355
      %s358 = sshll.u32 [#allocation10], 4
      %s359 = int_to_ptr.vmem [resolvable:$true] %s358
      %361 = dma.vmem_to_hbm [thread:$0]  %s359, 128, %s5, [#allocation4]
    $region41: #{tpu_custom_call.1} parent=1 // pred_fallthru
      _
    // Predicated region
    $region42: #{tpu_custom_call.1} parent=1 // pred_check
      _
    $region43: #{tpu_custom_call.1} parent=1 // pred_check_branch
      %363 = sbr.rel (0) target = $region45
    $region44: #{tpu_custom_call.1} parent=1 // pred_region
      %364 = dma.done [#allocation4], 128
    $region45: #{tpu_custom_call.1} parent=1 // pred_fallthru
      _
    %365 = vsyncpa [#allocation3], 1
    %366 = vsyncpa [#allocation6], 1
    %367 = vsyncpa [#allocation9], 1
    %368 = vsyncpa [#allocation4], 1

</llo_original>
